<compile_context>
chip_gen: v6e
topology: v6e:2x2x1
jax: 0.10.0
libtpu: 0.0.40
codegen_flags: <defaults>
</compile_context>

<pallas_src>
import functools
import math

import jax
import jax.numpy as jnp
import numpy as np
from jax import lax
from jax.experimental import pallas as pl
from jax.experimental.pallas import tpu as pltpu

_VMEM_LIMIT = 48 * 1024 * 1024  # headroom under v7x's 64 MiB physical VMEM


# ----------------------------- tile-size helper -----------------------------

def _pick_tile(dim, target, align):
    """Largest tile <= target that is a multiple of `align` and divides `dim`
    evenly; falls back to the full dim (always a legal block shape)."""
    if dim <= target:
        return dim
    t = (target // align) * align
    while t >= align:
        if dim % t == 0:
            return t
        t -= align
    return dim


# ------------------------ tiled linear: y = x @ W_t + b ----------------------

def _linear_kernel(x_ref, w_ref, b_ref, o_ref, acc_ref):
    k = pl.program_id(2)

    @pl.when(k == 0)
    def _():
        acc_ref[...] = jnp.zeros_like(acc_ref)

    acc_ref[...] += jnp.dot(x_ref[...], w_ref[...],
                            preferred_element_type=jnp.float32)

    @pl.when(k == pl.num_programs(2) - 1)
    def _():
        # bias added once, on the final reduction step only
        o_ref[...] = (acc_ref[...] + b_ref[...]).astype(o_ref.dtype)


def pallas_linear(x2d, w_t, b, *, out_dtype=None, tm=512, tn=512, tk=512):
    """y = x2d @ w_t + b.  `w_t` is stored (Din, Dout) — pre-transposed once at
    parameter-prep time, so the MXU consumes it directly.  Operands may be
    bf16; the accumulator is always f32."""
    M, K = x2d.shape
    K2, N = w_t.shape
    assert K == K2
    out_dtype = out_dtype or x2d.dtype
    tm = _pick_tile(M, tm, 8)
    tn = _pick_tile(N, tn, 128)
    tk = _pick_tile(K, tk, 128)
    grid = (M // tm, N // tn, K // tk)
    return pl.pallas_call(
        _linear_kernel,
        out_shape=jax.ShapeDtypeStruct((M, N), out_dtype),
        grid_spec=pltpu.PrefetchScalarGridSpec(
            num_scalar_prefetch=0,
            grid=grid,
            in_specs=[
                pl.BlockSpec((tm, tk), lambda i, j, k: (i, k)),
                pl.BlockSpec((tk, tn), lambda i, j, k: (k, j)),
                pl.BlockSpec((1, tn), lambda i, j, k: (0, j)),
            ],
            out_specs=pl.BlockSpec((tm, tn), lambda i, j, k: (i, j)),
            scratch_shapes=[pltpu.VMEM((tm, tn), jnp.float32)],
        ),
        compiler_params=pltpu.CompilerParams(
            dimension_semantics=("parallel", "parallel", "arbitrary"),
            vmem_limit_bytes=_VMEM_LIMIT),
    )(x2d, w_t, b.reshape(1, N))


# --------------- fused attention + head-merge + output projection ------------
#
# grid = (B, Sq // tq, h); head axis last and "arbitrary" (output accumulates
# across heads), batch / q-tile axes "parallel" (megacore / 2-TC friendly).

def _attn_kernel(q_ref, k_ref, v_ref, wo_ref, bo_ref, o_ref, acc_ref):
    head = pl.program_id(2)

    @pl.when(head == 0)
    def _():
        acc_ref[...] = jnp.zeros_like(acc_ref)

    q = q_ref[0, 0]                      # (tq, d_k)   — 1/sqrt(d_k) pre-folded
    k = k_ref[0, 0]                      # (S_kv, d_k)
    v = v_ref[0, 0]                      # (S_kv, d_k)

    # contract last dims directly -> no explicit k.T inside the kernel
    scores = lax.dot_general(q, k, (((1,), (1,)), ((), ())),
                             preferred_element_type=jnp.float32)   # (tq, S_kv)
    m = jnp.max(scores, axis=-1, keepdims=True)
    e = jnp.exp(scores - m)
    denom = jnp.sum(e, axis=-1, keepdims=True)
    # exact reciprocal keeps the 1e-5 f32 parity gate; approx=True routes to EUP
    p = e * pl.reciprocal(denom, approx=False)

    ctx = jnp.dot(p.astype(v_ref.dtype), v,
                  preferred_element_type=jnp.float32)               # (tq, d_k)

    # head-merge + Wo fused:  x @ Wo == sum_h ctx_h @ Wo[h]
    acc_ref[...] += jnp.dot(ctx.astype(wo_ref.dtype), wo_ref[0],
                            preferred_element_type=jnp.float32)     # (tq, D)

    @pl.when(head == pl.num_programs(2) - 1)
    def _():
        o_ref[0] = (acc_ref[...] + bo_ref[...]).astype(o_ref.dtype)


def pallas_attention_outproj(q, k, v, w_o_h, b_o, *, out_dtype, tq=256):
    """q: (B, h, Sq, d_k); k, v: (B, h, Skv, d_k); w_o_h: (h, d_k, D).
    Returns (B, Sq, D) = softmax(q k^T) v  (head-merged)  @ Wo + bo."""
    B, h, Sq, d_k = q.shape
    Skv = k.shape[2]
    D = h * d_k
    tq = _pick_tile(Sq, tq, 8)
    grid = (B, Sq // tq, h)
    return pl.pallas_call(
        _attn_kernel,
        out_shape=jax.ShapeDtypeStruct((B, Sq, D), out_dtype),
        grid_spec=pltpu.PrefetchScalarGridSpec(
            num_scalar_prefetch=0,
            grid=grid,
            in_specs=[
                pl.BlockSpec((1, 1, tq, d_k), lambda b, qi, hd: (b, hd, qi, 0)),
                pl.BlockSpec((1, 1, Skv, d_k), lambda b, qi, hd: (b, hd, 0, 0)),
                pl.BlockSpec((1, 1, Skv, d_k), lambda b, qi, hd: (b, hd, 0, 0)),
                pl.BlockSpec((1, d_k, D), lambda b, qi, hd: (hd, 0, 0)),
                pl.BlockSpec((1, D), lambda b, qi, hd: (0, 0)),
            ],
            out_specs=pl.BlockSpec((1, tq, D), lambda b, qi, hd: (b, qi, 0)),
            scratch_shapes=[pltpu.VMEM((tq, D), jnp.float32)],
        ),
        compiler_params=pltpu.CompilerParams(
            dimension_semantics=("parallel", "parallel", "arbitrary"),
            vmem_limit_bytes=_VMEM_LIMIT),
    )(q, k, v, w_o_h, b_o.reshape(1, D))


# ------------------------------ parameter prep -------------------------------

def prepare_params(torch_style_params, h, compute_dtype=jnp.float32):
    """Pre-transpose / fuse / pre-scale weights ONCE (not per forward).

    torch_style_params = ((Wq, bq), (Wk, bk), (Wv, bv), (Wo, bo)),
    with each W shaped (Dout, Din) as in torch.nn.Linear.
    1/sqrt(d_k) is folded into the Q columns; Wo is stored head-major
    (h, d_k, D) so the attention kernel can fuse the output projection.
    """
    (wq, bq), (wk, bk), (wv, bv), (wo, bo) = torch_style_params
    D = wq.shape[0]
    d_k = D // h
    scale = 1.0 / math.sqrt(d_k)
    w_qkv_t = jnp.concatenate([wq.T * scale, wk.T, wv.T],
                              axis=1).astype(compute_dtype)        # (Din, 3D)
    b_qkv = jnp.concatenate([bq * scale, bk, bv], axis=0)          # (3D,) f32
    w_o_h = wo.T.reshape(h, d_k, D).astype(compute_dtype)          # (h, d_k, D)
    b_o = bo.astype(jnp.float32)                                   # (D,)
    return dict(w_qkv_t=w_qkv_t, b_qkv=b_qkv, w_o_h=w_o_h, b_o=b_o,
                h=h, d_k=d_k, compute_dtype=compute_dtype)


# ------------------------------- module forward ------------------------------

def multi_headed_attention(params, query, key, value, mask=None):
    """Pallas MultiHeadedAttention.forward (mask=None, dropout = eval identity)."""
    assert mask is None  # TODO(synk): mask (masked_fill -1e9) path not implemented
    h, d_k = params["h"], params["d_k"]
    cdt = params["compute_dtype"]
    w_qkv_t, b_qkv = params["w_qkv_t"], params["b_qkv"]
    B, Sq, D = query.shape

    def head_major(y2d, seq):
        # (B*seq, D) -> (B, h, seq, d_k); layout plumbing done once by XLA so
        # the attention kernel gets Pallas-managed per-head tiles.
        return y2d.reshape(B, seq, h, d_k).transpose(0, 2, 1, 3)

    if (query is key) and (key is value):
        # self-attention: one fused QKV matmul -> 1 kernel launch, 1 read of x.
        qkv = pallas_linear(query.reshape(B * Sq, D).astype(cdt),
                            w_qkv_t, b_qkv, out_dtype=cdt)
        q = head_major(qkv[:, :D], Sq)
        k = head_major(qkv[:, D:2 * D], Sq)
        v = head_major(qkv[:, 2 * D:], Sq)
    else:
        # cross-attention: separate projections, fed straight to the attention
        # kernel as three inputs (no concatenate -> no extra HBM round trip).
        Skv = key.shape[1]
        q = head_major(pallas_linear(query.reshape(B * Sq, D).astype(cdt),
                                     w_qkv_t[:, :D], b_qkv[:D], out_dtype=cdt), Sq)
        k = head_major(pallas_linear(key.reshape(B * Skv, D).astype(cdt),
                                     w_qkv_t[:, D:2 * D], b_qkv[D:2 * D],
                                     out_dtype=cdt), Skv)
        v = head_major(pallas_linear(value.reshape(B * Skv, D).astype(cdt),
                                     w_qkv_t[:, 2 * D:], b_qkv[2 * D:],
                                     out_dtype=cdt), Skv)

    return pallas_attention_outproj(q, k, v, params["w_o_h"], params["b_o"],
                                    out_dtype=query.dtype)


# ------------------------------- JAX reference -------------------------------

def reference_mha(torch_params, query, key, value, h):
    (wq, bq), (wk, bk), (wv, bv), (wo, bo) = torch_params
    B, S, D = query.shape
    d_k = D // h

    def proj(x, w, b):
        y = x @ w.T + b
        return y.reshape(B, -1, h, d_k).transpose(0, 2, 1, 3)

    q, k, v = proj(query, wq, bq), proj(key, wk, bk), proj(value, wv, bv)
    scores = jnp.einsum("bhqd,bhkd->bhqk", q, k) / math.sqrt(d_k)
    p = jax.nn.softmax(scores, axis=-1)
    x = jnp.einsum("bhqk,bhkd->bhqd", p, v)
    x = x.transpose(0, 2, 1, 3).reshape(B, -1, D)
    return x @ wo.T + bo


# ------------------------------------ main ------------------------------------

if __name__ == "__main__":
    B, S, D, H = 2, 8, 32, 4  # batch, seq, d_model, heads  (d_k = 8)

    root = jax.random.PRNGKey(0)
    keys = jax.random.split(root, 11)
    bound = 1.0 / math.sqrt(D)  # torch nn.Linear default init bound

    def lin_params(kw, kb):
        w = jax.random.uniform(kw, (D, D), jnp.float32, -bound, bound)
        b = jax.random.uniform(kb, (D,), jnp.float32, -bound, bound)
        return w, b

    torch_params = (
        lin_params(keys[0], keys[1]),  # W_q, b_q
        lin_params(keys[2], keys[3]),  # W_k, b_k
        lin_params(keys[4], keys[5]),  # W_v, b_v
        lin_params(keys[6], keys[7]),  # W_o, b_o
    )

    x_self = jax.random.normal(keys[8], (B, S, D), jnp.float32)
    key_in = jax.random.normal(keys[9], (B, S, D), jnp.float32)
    value_in = jax.random.normal(keys[10], (B, S, D), jnp.float32)

    # ---- f32 path (1e-5 parity with the PyTorch-equivalent reference) ----
    prep_f32 = prepare_params(torch_params, H, compute_dtype=jnp.float32)

    out_self = jax.block_until_ready(
        multi_headed_attention(prep_f32, x_self, x_self, x_self))
    ref_self = reference_mha(torch_params, x_self, x_self, x_self, H)
    assert out_self.shape == (B, S, D)
    assert np.allclose(np.asarray(out_self), np.asarray(ref_self),
                       atol=1e-5, rtol=1e-5), "self-attn (f32) mismatch vs reference"

    out_cross = jax.block_until_ready(
        multi_headed_attention(prep_f32, x_self, key_in, value_in))
    ref_cross = reference_mha(torch_params, x_self, key_in, value_in, H)
    assert out_cross.shape == (B, S, D)
    assert np.allclose(np.asarray(out_cross), np.asarray(ref_cross),
                       atol=1e-5, rtol=1e-5), "cross-attn (f32) mismatch vs reference"

    # ---- bf16 MXU-operand path (f32 accumulation; loose sanity tolerance) ----
    prep_bf16 = prepare_params(torch_params, H, compute_dtype=jnp.bfloat16)
    out_bf16 = jax.block_until_ready(
        multi_headed_attention(prep_bf16, x_self, x_self, x_self))
    assert out_bf16.shape == (B, S, D)
    assert np.allclose(np.asarray(out_bf16), np.asarray(ref_self),
                       atol=1e-1, rtol=1e-1), "self-attn (bf16) sanity mismatch"

    print("KERNEL_OK")
</pallas_src>

<mosaic_0001>
module attributes {stable_mosaic.version = 11 : i64} {
  func.func @_linear_kernel(%arg0: i32, %arg1: i32, %arg2: i32, %arg3: memref<16x32xf32, #tpu.memory_space<vmem>>, %arg4: memref<32x96xf32, #tpu.memory_space<vmem>>, %arg5: memref<1x96xf32, #tpu.memory_space<vmem>>, %arg6: memref<16x96xf32, #tpu.memory_space<vmem>>, %arg7: memref<16x96xf32, #tpu.memory_space<vmem>>) attributes {dimension_semantics = [#tpu.dimension_semantics<parallel>, #tpu.dimension_semantics<parallel>, #tpu.dimension_semantics<arbitrary>], iteration_bounds = array<i64: 1, 1, 1>, scalar_prefetch = 0 : i64, scratch_operands = 1 : i64, tpu.core_type = #tpu.core_type<tc>, window_params = [{transform_indices = @transform_0, window_bounds = array<i64: 16, 32>}, {transform_indices = @transform_1, window_bounds = array<i64: 32, 96>}, {transform_indices = @transform_2, window_bounds = array<i64: 1, 96>}, {transform_indices = @transform_3, window_bounds = array<i64: 16, 96>}]} {
    %c0_i32 = arith.constant 0 : i32
    %0 = arith.cmpi eq, %arg2, %c0_i32 : i32
    %1 = arith.extui %0 : i1 to i32
    %c0_i32_0 = arith.constant 0 : i32
    %2 = arith.cmpi ne, %1, %c0_i32_0 : i32
    scf.if %2 {
      %cst_10 = arith.constant 0.000000e+00 : f32
      %12 = vector.broadcast %cst_10 : f32 to vector<16x96xf32>
      %c0_11 = arith.constant 0 : index
      %c0_12 = arith.constant 0 : index
      %13 = vector.load %arg7[%c0_11, %c0_12] : memref<16x96xf32, #tpu.memory_space<vmem>>, vector<16x96xf32>
      tpu.vector_store %arg7[%c0_11, %c0_12], %12 {strides = array<i32>} : memref<16x96xf32, #tpu.memory_space<vmem>>, vector<16x96xf32>,
    } else {
    }
    %c0 = arith.constant 0 : index
    %c0_1 = arith.constant 0 : index
    %3 = vector.load %arg7[%c0, %c0_1] : memref<16x96xf32, #tpu.memory_space<vmem>>, vector<16x96xf32>
    %c0_2 = arith.constant 0 : index
    %c0_3 = arith.constant 0 : index
    %4 = vector.load %arg3[%c0_2, %c0_3] : memref<16x32xf32, #tpu.memory_space<vmem>>, vector<16x32xf32>
    %c0_4 = arith.constant 0 : index
    %c0_5 = arith.constant 0 : index
    %5 = vector.load %arg4[%c0_4, %c0_5] : memref<32x96xf32, #tpu.memory_space<vmem>>, vector<32x96xf32>
    %cst = arith.constant dense<0.000000e+00> : vector<16x96xf32>
    %6 = tpu.matmul %4, %5, %cst {dimension_numbers = #tpu.dot_dimension_numbers<[1], [0], [0], [1], [0, 0, 1, 1], [], []>} : vector<16x32xf32>, vector<32x96xf32>, vector<16x96xf32> -> vector<16x96xf32>
    %7 = arith.addf %3, %6 : vector<16x96xf32>
    %c0_6 = arith.constant 0 : index
    %c0_7 = arith.constant 0 : index
    %8 = vector.load %arg7[%c0_6, %c0_7] : memref<16x96xf32, #tpu.memory_space<vmem>>, vector<16x96xf32>
    tpu.vector_store %arg7[%c0_6, %c0_7], %7 {strides = array<i32>} : memref<16x96xf32, #tpu.memory_space<vmem>>, vector<16x96xf32>,
    %c0_i32_8 = arith.constant 0 : i32
    %9 = arith.cmpi eq, %arg2, %c0_i32_8 : i32
    %10 = arith.extui %9 : i1 to i32
    %c0_i32_9 = arith.constant 0 : i32
    %11 = arith.cmpi ne, %10, %c0_i32_9 : i32
    scf.if %11 {
      %c0_10 = arith.constant 0 : index
      %c0_11 = arith.constant 0 : index
      %12 = vector.load %arg7[%c0_10, %c0_11] : memref<16x96xf32, #tpu.memory_space<vmem>>, vector<16x96xf32>
      %c0_12 = arith.constant 0 : index
      %c0_13 = arith.constant 0 : index
      %13 = vector.load %arg5[%c0_12, %c0_13] : memref<1x96xf32, #tpu.memory_space<vmem>>, vector<1x96xf32>
      %14 = vector.broadcast %13 : vector<1x96xf32> to vector<16x96xf32>
      %15 = arith.addf %12, %14 : vector<16x96xf32>
      %c0_14 = arith.constant 0 : index
      %c0_15 = arith.constant 0 : index
      %16 = vector.load %arg6[%c0_14, %c0_15] : memref<16x96xf32, #tpu.memory_space<vmem>>, vector<16x96xf32>
      tpu.vector_store %arg6[%c0_14, %c0_15], %15 {strides = array<i32>} : memref<16x96xf32, #tpu.memory_space<vmem>>, vector<16x96xf32>,
    } else {
    }
    return
  }
  func.func @transform_0(%arg0: i32, %arg1: i32, %arg2: i32) -> (i32, i32) {
    %c0_i32 = arith.constant 0 : i32
    return %arg0, %arg2 : i32, i32
  }
  func.func @transform_1(%arg0: i32, %arg1: i32, %arg2: i32) -> (i32, i32) {
    %c0_i32 = arith.constant 0 : i32
    return %arg2, %arg1 : i32, i32
  }
  func.func @transform_2(%arg0: i32, %arg1: i32, %arg2: i32) -> (i32, i32) {
    %c0_i32 = arith.constant 0 : i32
    %c0_i32_0 = arith.constant 0 : i32
    return %c0_i32, %arg1 : i32, i32
  }
  func.func @transform_3(%arg0: i32, %arg1: i32, %arg2: i32) -> (i32, i32) {
    %c0_i32 = arith.constant 0 : i32
    return %arg0, %arg1 : i32, i32
  }
}

</mosaic_0001>

<llo_original>
// kernel: tpu_custom_call.1
$region0: #{tpu_custom_call.1}
  #allocation0 [shape = 'u32[]', space=smem, size = 0x4, offset = 0x4, fixed_abs, tag = 'smem constant byte address 0x4 - core index']
  #allocation1 [shape = 'u32[144,128]{1,0:T(1,128)}', space=vmem, size = 0x12000, scoped, tag = 'internal scratch']
  #allocation2 [shape = 'f32[16,96]{1,0:T(8,128)}', space=vmem, size = 0x2000, scoped, tag = 'scratch operand']
  %s0 = inlined_call_operand.hbm [shape: f32[16,32], index: 0, kind: input, shape index: {}]
  %s1 = inlined_call_operand.hbm [shape: f32[32,96], index: 1, kind: input, shape index: {}]
  %s2 = inlined_call_operand.vmem [shape: f32[1,96], index: 2, kind: input, shape index: {}]
  %s3 = inlined_call_operand.hbm [shape: f32[16,96], index: 3, kind: output, shape index: {}]
  %s4 = sld [smem:[#allocation0]]
  $region38: #{tpu_custom_call.1} parent=0
    _
  %s6 = ssub.s32 1, %s4
  %s7 = scalar_select 0, %s6, %s4
  $region1: #{tpu_custom_call.1} parent=0
    #allocation3 [shape = 'u8[8192]{0}', space=vmem, size = 0x2000, scoped, tag = 'input window, operand 0, single buffered']
    #allocation4 [shape = 's32[1]{0}', space=sflag, size = 0x4, scoped, tag = 'scoped memory for tpu_custom_call.1']
    #allocation5 [shape = 's32[1]{0}', space=sflag, size = 0x4, scoped, tag = 'scoped memory for tpu_custom_call.1']
    #allocation6 [shape = 'u8[16384]{0}', space=vmem, size = 0x4000, scoped, tag = 'input window, operand 1, single buffered']
    #allocation7 [shape = 's32[1]{0}', space=sflag, size = 0x4, scoped, tag = 'scoped memory for tpu_custom_call.1']
    #allocation8 [shape = 'u8[8192]{0}', space=vmem, size = 0x2000, scoped, tag = 'output window, operand 0, single buffered']
    %8 = vsyncpa [#allocation4], 0
    %9 = vsyncpa [#allocation7], 0
    %10 = vsyncpa [#allocation5], 0
    // Predicated region
    $region2: #{tpu_custom_call.1} parent=1 // pred_check
      _
    $region3: #{tpu_custom_call.1} parent=1 // pred_check_branch
      %12 = sbr.rel (0) target = $region5
    $region4: #{tpu_custom_call.1} parent=1 // pred_region
      %s14 = ssub.s32 256, 256
      %15 = vsyncadd [#allocation4], %s14
      %s16 = sshll.u32 [#allocation3], 4
      %s17 = int_to_ptr.vmem [resolvable:$true] %s16
      %22 = dma.hbm_to_vmem [thread:$0]  %s0, 256, %s17, [#allocation4], 128, 128, 8
    $region5: #{tpu_custom_call.1} parent=1 // pred_fallthru
      _
    // Predicated region
    $region6: #{tpu_custom_call.1} parent=1 // pred_check
      _
    $region7: #{tpu_custom_call.1} parent=1 // pred_check_branch
      %24 = sbr.rel (0) target = $region9
    $region8: #{tpu_custom_call.1} parent=1 // pred_region
      %s26 = ssub.s32 512, 512
      %27 = vsyncadd [#allocation7], %s26
      %s28 = sshll.u32 [#allocation6], 4
      %s29 = int_to_ptr.vmem [resolvable:$true] %s28
      %34 = dma.hbm_to_vmem [thread:$0]  %s1, 512, %s29, [#allocation7], 128, 128, 8
    $region9: #{tpu_custom_call.1} parent=1 // pred_fallthru
      _
    // Predicated region
    $region10: #{tpu_custom_call.1} parent=1 // pred_check
      _
    $region11: #{tpu_custom_call.1} parent=1 // pred_check_branch
      %36 = sbr.rel (0) target = $region13
    $region12: #{tpu_custom_call.1} parent=1 // pred_region
      _
    $region13: #{tpu_custom_call.1} parent=1 // pred_fallthru
      _
    // Predicated region
    $region14: #{tpu_custom_call.1} parent=1 // pred_check
      _
    $region15: #{tpu_custom_call.1} parent=1 // pred_check_branch
      %38 = sbr.rel (0) target = $region17
    $region16: #{tpu_custom_call.1} parent=1 // pred_region
      %39 = dma.done [#allocation4], 256
    $region17: #{tpu_custom_call.1} parent=1 // pred_fallthru
      _
    // Predicated region
    $region18: #{tpu_custom_call.1} parent=1 // pred_check
      _
    $region19: #{tpu_custom_call.1} parent=1 // pred_check_branch
      %41 = sbr.rel (0) target = $region21
    $region20: #{tpu_custom_call.1} parent=1 // pred_region
      %42 = dma.done [#allocation7], 512
    $region21: #{tpu_custom_call.1} parent=1 // pred_fallthru
      _
    %p43 = scmp.eq.s32.totalorder 0, 0
    // Predicated region
    $region22: #{tpu_custom_call.1} parent=1 // pred_check
      %p44 = pneg %p43
    $region23: #{tpu_custom_call.1} parent=1 // pred_check_branch
      %46 = sbr.rel (%p44) target = $region25
    $region24: #{tpu_custom_call.1} parent=1 // pred_region
      %vm47 = vcmask 785408
      %48 = vst.msk [vmem:[#allocation2] sm:$0xff] %vm47, 0.0
      %49 = vst.msk [vmem:[#allocation2 + $0x8] sm:$0xff] %vm47, 0.0
    $region25: #{tpu_custom_call.1} parent=1 // pred_fallthru
      _
    %v50 = vld [vmem:[#allocation2] sm:$0xff]
    %v51 = vld [vmem:[#allocation2 + $0x8] sm:$0xff]
    %v52 = vld [vmem:[#allocation3] sm:$0xff]
    %v53 = vld [vmem:[#allocation3 + $0x8] sm:$0xff]
    %v54 = vld [vmem:[#allocation6] sm:$0xff]
    %v55 = vld [vmem:[#allocation6 + $0x8] sm:$0xff]
    %v56 = vld [vmem:[#allocation6 + $0x10] sm:$0xff]
    %v57 = vld [vmem:[#allocation6 + $0x18] sm:$0xff]
    %vm58 = vcmask 261120
    %v60 = vsel %vm58, %v52, 0
    %v63 = vsel %vm58, %v53, 0
    %65 = vmatprep.subr.mxu0 0.0
    %66 = vmatpush1.msra.mxu0 0.0
    %67 = vmatprep.subr.mxu0 0.0
    %68 = vmatpush1.msra.mxu0 0.0
    %69 = vmatprep.subr.mxu0 0.0
    %70 = vmatpush1.msra.mxu0 0.0
    %71 = vmatprep.subr.mxu0 0.0
    %72 = vmatpush1.msra.mxu0 0.0
    %73 = vmatprep.subr.mxu0 0.0
    %74 = vmatpush1.msra.mxu0 0.0
    %75 = vmatprep.subr.mxu0 0.0
    %76 = vmatpush1.msra.mxu0 0.0
    %77 = vmatprep.subr.mxu0 0.0
    %78 = vmatpush1.msra.mxu0 0.0
    %79 = vmatprep.subr.mxu0 0.0
    %80 = vmatpush1.msra.mxu0 0.0
    %81 = vmatprep.subr.mxu0 0.0
    %82 = vmatpush1.msra.mxu0 0.0
    %83 = vmatprep.subr.mxu0 0.0
    %84 = vmatpush1.msra.mxu0 0.0
    %85 = vmatprep.subr.mxu0 0.0
    %86 = vmatpush1.msra.mxu0 0.0
    %87 = vmatprep.subr.mxu0 0.0
    %88 = vmatpush1.msra.mxu0 0.0
    %89 = vmatprep.subr.mxu0 0.0
    %90 = vmatpush1.msra.mxu0 %v57
    %91 = vmatprep.subr.mxu0 0.0
    %92 = vmatpush1.msra.mxu0 %v56
    %93 = vmatprep.subr.mxu0 0.0
    %94 = vmatpush1.msra.mxu0 %v55
    %95 = vmatprep.subr.mxu0 0.0
    %96 = vmatpush1.msra.mxu0 %v54
    %97 = vmatprep.subr.mxu0 0.0
    %98 = vmatpush2.msra.mxu0 0.0
    %99 = vmatprep.subr.mxu0 0.0
    %100 = vmatpush2.msra.mxu0 0.0
    %101 = vmatprep.subr.mxu0 0.0
    %102 = vmatpush2.msra.mxu0 0.0
    %103 = vmatprep.subr.mxu0 0.0
    %104 = vmatpush2.msra.mxu0 0.0
    %105 = vmatprep.subr.mxu0 0.0
    %106 = vmatpush2.msra.mxu0 0.0
    %107 = vmatprep.subr.mxu0 0.0
    %108 = vmatpush2.msra.mxu0 0.0
    %109 = vmatprep.subr.mxu0 0.0
    %110 = vmatpush2.msra.mxu0 0.0
    %111 = vmatprep.subr.mxu0 0.0
    %112 = vmatpush2.msra.mxu0 0.0
    %113 = vmatprep.subr.mxu0 0.0
    %114 = vmatpush2.msra.mxu0 0.0
    %115 = vmatprep.subr.mxu0 0.0
    %116 = vmatpush2.msra.mxu0 0.0
    %117 = vmatprep.subr.mxu0 0.0
    %118 = vmatpush2.msra.mxu0 0.0
    %119 = vmatprep.subr.mxu0 0.0
    %120 = vmatpush2.msra.mxu0 0.0
    %121 = vmatprep.subr.mxu0 0.0
    %122 = vmatpush2.msra.mxu0 0.0
    %123 = vmatprep.subr.mxu0 0.0
    %124 = vmatpush2.msra.mxu0 0.0
    %125 = vmatprep.subr.mxu0 0.0
    %126 = vmatpush2.msra.mxu0 0.0
    %127 = vmatprep.subr.mxu0 0.0
    %128 = vmatpush2.msra.mxu0 0.0
    %129 = vmatprep.mubr.f32.mxu0 0.0
    %130 = vmatmul.mubr.f32.gmra.mxu0 %v60
    %v131 = vpop.f32.mrf.mxu0
    %v132 = vadd.f32 0.0, %v131
    %v133 = vpop.f32.mrf.mxu0
    %134 = vmatprep.mubr.f32.mxu0 0.0
    %135 = vmatmul.mubr.f32.gmra.mxu0 %v63
    %v136 = vpop.f32.mrf.mxu0
    %v137 = vadd.f32 0.0, %v136
    %v138 = vpop.f32.mrf.mxu0
    %139 = vdwg.mxu0
    %v140 = vadd.f32 %v50, %v132
    %v141 = vadd.f32 %v51, %v137
    %vm142 = vcmask 785408
    %143 = vst.msk [vmem:[#allocation2] sm:$0xff] %vm142, %v140
    %144 = vst.msk [vmem:[#allocation2 + $0x8] sm:$0xff] %vm142, %v141
    // Predicated region
    $region26: #{tpu_custom_call.1} parent=1 // pred_check
      %p145 = pneg %p43
    $region27: #{tpu_custom_call.1} parent=1 // pred_check_branch
      %147 = sbr.rel (%p145) target = $region29
    $region28: #{tpu_custom_call.1} parent=1 // pred_region
      %v148 = vld [vmem:[#allocation2] sm:$0xff]
      %v149 = vld [vmem:[#allocation2 + $0x8] sm:$0xff]
      %v150 = vld [vmem:[%s2] sm:$0x1]
      %v152 = vlaneseq
      %v153 = vshrl.u32 %v152, 7
      %v154 = vsub.s32 0, %v153
      %v155 = vrot.slane %v150, %v154
      %v157 = vadd.f32 %v148, %v155
      %v158 = vadd.f32 %v149, %v155
      %159 = vst.msk [vmem:[#allocation8] sm:$0xff] %vm142, %v157
      %160 = vst.msk [vmem:[#allocation8 + $0x8] sm:$0xff] %vm142, %v158
    $region29: #{tpu_custom_call.1} parent=1 // pred_fallthru
      _
    // Predicated region
    $region30: #{tpu_custom_call.1} parent=1 // pred_check
      _
    $region31: #{tpu_custom_call.1} parent=1 // pred_check_branch
      %162 = sbr.rel (0) target = $region33
    $region32: #{tpu_custom_call.1} parent=1 // pred_region
      %s164 = ssub.s32 256, 256
      %165 = vsyncadd [#allocation5], %s164
      %s166 = sshll.u32 [#allocation8], 4
      %s167 = int_to_ptr.vmem [resolvable:$true] %s166
      %172 = dma.vmem_to_hbm [thread:$0]  %s167, 256, %s3, [#allocation5], 128, 128, 8
    $region33: #{tpu_custom_call.1} parent=1 // pred_fallthru
      _
    // Predicated region
    $region34: #{tpu_custom_call.1} parent=1 // pred_check
      _
    $region35: #{tpu_custom_call.1} parent=1 // pred_check_branch
      %174 = sbr.rel (0) target = $region37
    $region36: #{tpu_custom_call.1} parent=1 // pred_region
      %175 = dma.done [#allocation5], 256
    $region37: #{tpu_custom_call.1} parent=1 // pred_fallthru
      _
    %176 = vsyncpa [#allocation4], 1
    %177 = vsyncpa [#allocation7], 1
    %178 = vsyncpa [#allocation5], 1

</llo_original>
